<compile_context>
chip_gen: v5e
topology: v5e:2x2
jax: 0.10.0
libtpu: 0.0.40
codegen_flags: <defaults>
</compile_context>

<pallas_src>
import functools

import jax
import jax.numpy as jnp
from jax.experimental import pallas as pl
from jax.experimental.pallas import tpu as pltpu


def _round_up(x, m):
    return ((x + m - 1) // m) * m


# ----------------------------------------------------------------------------
# Pallas kernel: two fused MXU dots + activations + softmax, one dense out slab.
# ----------------------------------------------------------------------------
def _fused_ac_kernel(phi_ref, w1_ref, b1_ref, w2_ref, b2_ref, out_ref, *,
                     num_options, hidden, action_dim):
    O, H, A = num_options, hidden, action_dim
    OH2 = 2 * O * H
    OA = O * A

    phi = phi_ref[...]                                             # [TB, S] bf16

    # --- fused layer 1: all pi/beta option bodies + fc_pi_o + fc_q_o heads ---
    y1 = jnp.dot(phi, w1_ref[...],
                 preferred_element_type=jnp.float32) + b1_ref[...]  # [TB, N1] f32
    h = jnp.tanh(y1[:, :OH2])                                       # [TB, 2*O*H]
    logits = y1[:, OH2:OH2 + O]                                     # fc_pi_o(phi)
    q = y1[:, OH2 + O:OH2 + 2 * O]                                  # fc_q_o(phi)

    # --- fused layer 2: block-diagonal fc_pi / fc_beta across all options ---
    y2 = jnp.dot(h.astype(jnp.bfloat16), w2_ref[...],
                 preferred_element_type=jnp.float32) + b2_ref[...]  # [TB, N2] f32
    mean = jnp.tanh(y2[:, :OA])                                     # [TB, O*A]
    beta = jax.nn.sigmoid(y2[:, OA:OA + O])                         # [TB, O]

    # --- inter-option softmax / log-softmax ---
    m = jnp.max(logits, axis=-1, keepdims=True)
    e = jnp.exp(logits - m)
    s = jnp.sum(e, axis=-1, keepdims=True)
    pi = e / s
    logpi = (logits - m) - jnp.log(s)

    # --- single lane-dense output slab: mean | beta | q | pi | logpi | zero-pad ---
    tb = mean.shape[0]
    nout = out_ref.shape[-1]
    out_ref[:, 0:OA] = mean
    out_ref[:, OA:OA + O] = beta
    out_ref[:, OA + O:OA + 2 * O] = q
    out_ref[:, OA + 2 * O:OA + 3 * O] = pi
    out_ref[:, OA + 3 * O:OA + 4 * O] = logpi
    if nout > OA + 4 * O:
        out_ref[:, OA + 4 * O:nout] = jnp.zeros((tb, nout - OA - 4 * O), jnp.float32)


# ----------------------------------------------------------------------------
# Wrapper glue: weight fusion/packing, pallas_call, output slicing.
# ----------------------------------------------------------------------------
def _pack_fused_weights(params):
    O, S, H = params["w1_pi"].shape
    A = params["w_pi"].shape[-1]

    # Layer 1 fused weight: columns = [pi-bodies (O*H) | beta-bodies (O*H) | pi_o (O) | q_o (O)]
    w1_pi = jnp.transpose(params["w1_pi"], (1, 0, 2)).reshape(S, O * H)
    w1_b = jnp.transpose(params["w1_b"], (1, 0, 2)).reshape(S, O * H)
    w1 = jnp.concatenate([w1_pi, w1_b, params["w_pio"], params["w_qo"]], axis=1)
    b1 = jnp.concatenate([params["b1_pi"].reshape(1, O * H),
                          params["b1_b"].reshape(1, O * H),
                          params["b_pio"], params["b_qo"]], axis=1)
    n1 = _round_up(w1.shape[1], 128)
    w1 = jnp.pad(w1, ((0, 0), (0, n1 - w1.shape[1])))
    b1 = jnp.pad(b1, ((0, 0), (0, n1 - b1.shape[1])))

    # Layer 2 fused weight: block-diagonal [2*O*H, O*A + O]
    #   rows = [pi hiddens per option | beta hiddens per option]
    #   cols = [mean per option (A each) | beta per option (1 each)]
    blocks = ([params["w_pi"][o] for o in range(O)]
              + [params["w_b"][o] for o in range(O)])
    w2 = jax.scipy.linalg.block_diag(*blocks)
    b2 = jnp.concatenate([params["b_pi"].reshape(1, O * A),
                          params["b_b"].reshape(1, O)], axis=1)
    n2 = _round_up(w2.shape[1], 128)
    w2 = jnp.pad(w2, ((0, 0), (0, n2 - w2.shape[1])))
    b2 = jnp.pad(b2, ((0, 0), (0, n2 - b2.shape[1])))

    # bf16 MXU operands, f32 biases (added after f32 accumulation).
    return (w1.astype(jnp.bfloat16), b1.astype(jnp.float32),
            w2.astype(jnp.bfloat16), b2.astype(jnp.float32))


@functools.partial(jax.jit, static_argnames=("unsqueeze",))
def option_gaussian_actor_critic_forward(obs, params, unsqueeze=False):
    if unsqueeze:
        obs = obs[None, :]
    obs = obs.astype(jnp.float32)
    B, S = obs.shape
    O, _, H = params["w1_pi"].shape
    A = params["w_pi"].shape[-1]
    OA = O * A

    w1, b1, w2, b2 = _pack_fused_weights(params)
    n_out = _round_up(OA + 4 * O, 128)

    # Batch tiling: full batch in one block when small; 1024-row tiles otherwise
    # (multiple of 8/16, sized well within v7x's 64 MiB VMEM budget).
    TB = B if B <= 1024 else 1024
    grid = (pl.cdiv(B, TB),)

    phi = obs.astype(jnp.bfloat16)   # bf16 MXU operands, f32 accumulation

    kernel = functools.partial(_fused_ac_kernel,
                               num_options=O, hidden=H, action_dim=A)

    def _replicated(arr):
        zeros = (0,) * arr.ndim
        return pl.BlockSpec(arr.shape, lambda i: zeros)

    slab = pl.pallas_call(
        kernel,
        out_shape=jax.ShapeDtypeStruct((B, n_out), jnp.float32),
        grid=grid,
        in_specs=[pl.BlockSpec((TB, S), lambda i: (i, 0)),
                  _replicated(w1), _replicated(b1),
                  _replicated(w2), _replicated(b2)],
        out_specs=pl.BlockSpec((TB, n_out), lambda i: (i, 0)),
        compiler_params=pltpu.CompilerParams(
            dimension_semantics=("parallel",),
            vmem_limit_bytes=32 * 1024 * 1024,
        ),
    )(phi, w1, b1, w2, b2)

    mean = slab[:, :OA].reshape(B, O, A)
    beta = slab[:, OA:OA + O]
    q_o = slab[:, OA + O:OA + 2 * O]
    inter_pi = slab[:, OA + 2 * O:OA + 3 * O]
    log_inter_pi = slab[:, OA + 3 * O:OA + 4 * O]

    # std is observation-independent: stable softplus in plain JAX, broadcast.
    std = jnp.broadcast_to(jax.nn.softplus(params["std"]).reshape(1, O, A), (B, O, A))

    return {"mean": mean, "std": std, "beta": beta, "q_o": q_o,
            "inter_pi": inter_pi, "log_inter_pi": log_inter_pi}


# ----------------------------------------------------------------------------
# Parameter init (matches the torch module: layer_init gain 1e-3 on heads,
# std parameter initialized to zeros).
# ----------------------------------------------------------------------------
def init_params(key, state_dim, action_dim, num_options, hidden):
    S, A, O, H = state_dim, action_dim, num_options, hidden
    ks = jax.random.split(key, 8)
    f32 = jnp.float32

    def normal(k, shape, scale):
        return (jax.random.normal(k, shape, dtype=f32) * scale).astype(f32)

    return {
        # per-option pi body (FC, tanh) + fc_pi head
        "w1_pi": normal(ks[0], (O, S, H), 1.0 / jnp.sqrt(S)),
        "b1_pi": jnp.zeros((O, 1, H), f32),
        "w_pi":  normal(ks[1], (O, H, A), 1e-3),
        "b_pi":  jnp.zeros((O, 1, A), f32),
        "std":   jnp.zeros((O, 1, A), f32),            # nn.Parameter(zeros)
        # per-option beta body (FC, tanh) + fc_beta head
        "w1_b":  normal(ks[2], (O, S, H), 1.0 / jnp.sqrt(S)),
        "b1_b":  jnp.zeros((O, 1, H), f32),
        "w_b":   normal(ks[3], (O, H, 1), 1e-3),
        "b_b":   jnp.zeros((O, 1, 1), f32),
        # shared heads
        "w_pio": normal(ks[4], (S, O), 1e-3),
        "b_pio": jnp.zeros((1, O), f32),
        "w_qo":  normal(ks[5], (S, O), 1e-3),
        "b_qo":  jnp.zeros((1, O), f32),
    }


# ----------------------------------------------------------------------------
# Pure-JAX f32 reference (torch-faithful) for correctness checking.
# ----------------------------------------------------------------------------
def reference_forward(obs, params):
    phi = obs.astype(jnp.float32)
    means, stds, betas = [], [], []
    O = params["w1_pi"].shape[0]
    for o in range(O):
        h_pi = jnp.tanh(phi @ params["w1_pi"][o] + params["b1_pi"][o])
        mean = jnp.tanh(h_pi @ params["w_pi"][o] + params["b_pi"][o])
        std = jnp.broadcast_to(jax.nn.softplus(params["std"][o]), mean.shape)
        h_b = jnp.tanh(phi @ params["w1_b"][o] + params["b1_b"][o])
        beta = jax.nn.sigmoid(h_b @ params["w_b"][o] + params["b_b"][o])
        means.append(mean[:, None, :]); stds.append(std[:, None, :]); betas.append(beta)
    logits = phi @ params["w_pio"] + params["b_pio"]
    return {
        "mean": jnp.concatenate(means, axis=1),
        "std": jnp.concatenate(stds, axis=1),
        "beta": jnp.concatenate(betas, axis=1),
        "q_o": phi @ params["w_qo"] + params["b_qo"],
        "inter_pi": jax.nn.softmax(logits, axis=-1),
        "log_inter_pi": jax.nn.log_softmax(logits, axis=-1),
    }


if __name__ == "__main__":
    B, S, A, O, H = 2, 16, 6, 3, 32   # batch, state_dim, action_dim, num_options, hidden

    key = jax.random.PRNGKey(0)
    k_obs, k_params = jax.random.split(key)
    obs = jax.random.normal(k_obs, (B, S), dtype=jnp.float32)
    params = init_params(k_params, S, A, O, H)

    out = option_gaussian_actor_critic_forward(obs, params, unsqueeze=False)
    out = jax.tree_util.tree_map(jax.block_until_ready, out)

    ref = reference_forward(obs, params)
    for name in ("mean", "std", "beta", "q_o", "inter_pi", "log_inter_pi"):
        assert out[name].shape == ref[name].shape, (name, out[name].shape, ref[name].shape)
        # bf16 MXU operands w/ f32 accumulation: tolerance a bit looser than pure-f32
        assert jnp.allclose(out[name], ref[name], atol=5e-4, rtol=1e-3), name

    print("KERNEL_OK")
</pallas_src>

<mosaic_0001>
module attributes {stable_mosaic.version = 11 : i64} {
  func.func @_fused_ac_kernel(%arg0: i32, %arg1: memref<2x16xbf16, #tpu.memory_space<vmem>>, %arg2: memref<16x256xbf16, #tpu.memory_space<vmem>>, %arg3: memref<1x256xf32, #tpu.memory_space<vmem>>, %arg4: memref<192x128xbf16, #tpu.memory_space<vmem>>, %arg5: memref<1x128xf32, #tpu.memory_space<vmem>>, %arg6: memref<2x128xf32, #tpu.memory_space<vmem>>) attributes {dimension_semantics = [#tpu.dimension_semantics<parallel>], iteration_bounds = array<i64: 1>, scalar_prefetch = 0 : i64, scratch_operands = 0 : i64, tpu.core_type = #tpu.core_type<tc>, window_params = [{transform_indices = @transform_0, window_bounds = array<i64: 2, 16>}, {pipeline_mode = #tpu.pipeline_mode<synchronous>, transform_indices = @transform_1, window_bounds = array<i64: 16, 256>}, {pipeline_mode = #tpu.pipeline_mode<synchronous>, transform_indices = @transform_2, window_bounds = array<i64: 1, 256>}, {pipeline_mode = #tpu.pipeline_mode<synchronous>, transform_indices = @transform_3, window_bounds = array<i64: 192, 128>}, {pipeline_mode = #tpu.pipeline_mode<synchronous>, transform_indices = @transform_4, window_bounds = array<i64: 1, 128>}, {transform_indices = @transform_5, window_bounds = array<i64: 2, 128>}]} {
    %c0 = arith.constant 0 : index
    %c0_0 = arith.constant 0 : index
    %0 = vector.load %arg1[%c0, %c0_0] : memref<2x16xbf16, #tpu.memory_space<vmem>>, vector<2x16xbf16>
    %c0_1 = arith.constant 0 : index
    %c0_2 = arith.constant 0 : index
    %1 = vector.load %arg2[%c0_1, %c0_2] : memref<16x256xbf16, #tpu.memory_space<vmem>>, vector<16x256xbf16>
    %cst = arith.constant dense<0.000000e+00> : vector<2x256xf32>
    %2 = tpu.matmul %0, %1, %cst {dimension_numbers = #tpu.dot_dimension_numbers<[1], [0], [0], [1], [0, 0, 1, 1], [], []>} : vector<2x16xbf16>, vector<16x256xbf16>, vector<2x256xf32> -> vector<2x256xf32>
    %c0_3 = arith.constant 0 : index
    %c0_4 = arith.constant 0 : index
    %3 = vector.load %arg3[%c0_3, %c0_4] : memref<1x256xf32, #tpu.memory_space<vmem>>, vector<1x256xf32>
    %4 = vector.broadcast %3 : vector<1x256xf32> to vector<2x256xf32>
    %5 = arith.addf %2, %4 : vector<2x256xf32>
    %6 = vector.extract_strided_slice %5 {offsets = [0, 0], sizes = [2, 192], strides = [1, 1]} : vector<2x256xf32> to vector<2x192xf32>
    %7 = math.tanh %6 : vector<2x192xf32>
    %8 = vector.extract_strided_slice %5 {offsets = [0, 192], sizes = [2, 3], strides = [1, 1]} : vector<2x256xf32> to vector<2x3xf32>
    %9 = vector.extract_strided_slice %5 {offsets = [0, 195], sizes = [2, 3], strides = [1, 1]} : vector<2x256xf32> to vector<2x3xf32>
    %10 = arith.truncf %7 : vector<2x192xf32> to vector<2x192xbf16>
    %c0_5 = arith.constant 0 : index
    %c0_6 = arith.constant 0 : index
    %11 = vector.load %arg4[%c0_5, %c0_6] : memref<192x128xbf16, #tpu.memory_space<vmem>>, vector<192x128xbf16>
    %cst_7 = arith.constant dense<0.000000e+00> : vector<2x128xf32>
    %12 = tpu.matmul %10, %11, %cst_7 {dimension_numbers = #tpu.dot_dimension_numbers<[1], [0], [0], [1], [0, 0, 1, 1], [], []>} : vector<2x192xbf16>, vector<192x128xbf16>, vector<2x128xf32> -> vector<2x128xf32>
    %c0_8 = arith.constant 0 : index
    %c0_9 = arith.constant 0 : index
    %13 = vector.load %arg5[%c0_8, %c0_9] : memref<1x128xf32, #tpu.memory_space<vmem>>, vector<1x128xf32>
    %14 = vector.broadcast %13 : vector<1x128xf32> to vector<2x128xf32>
    %15 = arith.addf %12, %14 : vector<2x128xf32>
    %16 = vector.extract_strided_slice %15 {offsets = [0, 0], sizes = [2, 18], strides = [1, 1]} : vector<2x128xf32> to vector<2x18xf32>
    %17 = math.tanh %16 : vector<2x18xf32>
    %18 = vector.extract_strided_slice %15 {offsets = [0, 18], sizes = [2, 3], strides = [1, 1]} : vector<2x128xf32> to vector<2x3xf32>
    %19 = arith.negf %18 : vector<2x3xf32>
    %20 = math.exp %19 : vector<2x3xf32>
    %cst_10 = arith.constant 1.000000e+00 : f32
    %21 = vector.broadcast %cst_10 : f32 to vector<2x3xf32>
    %22 = arith.addf %21, %20 : vector<2x3xf32>
    %23 = arith.divf %21, %22 : vector<2x3xf32>
    %cst_11 = arith.constant dense<0xFF800000> : vector<2xf32>
    %24 = vector.multi_reduction <maximumf>, %8, %cst_11 [1] : vector<2x3xf32> to vector<2xf32>
    %25 = vector.shape_cast %24 : vector<2xf32> to vector<2x1xf32>
    %26 = vector.broadcast %25 : vector<2x1xf32> to vector<2x3xf32>
    %27 = arith.subf %8, %26 : vector<2x3xf32>
    %28 = math.exp %27 : vector<2x3xf32>
    %cst_12 = arith.constant dense<0.000000e+00> : vector<2xf32>
    %29 = vector.multi_reduction <add>, %28, %cst_12 [1] : vector<2x3xf32> to vector<2xf32>
    %30 = vector.shape_cast %29 : vector<2xf32> to vector<2x1xf32>
    %31 = vector.broadcast %30 : vector<2x1xf32> to vector<2x3xf32>
    %32 = arith.divf %28, %31 : vector<2x3xf32>
    %33 = vector.broadcast %25 : vector<2x1xf32> to vector<2x3xf32>
    %34 = arith.subf %8, %33 : vector<2x3xf32>
    %35 = math.log %30 : vector<2x1xf32>
    %36 = vector.broadcast %35 : vector<2x1xf32> to vector<2x3xf32>
    %37 = arith.subf %34, %36 : vector<2x3xf32>
    %c0_13 = arith.constant 0 : index
    %c0_14 = arith.constant 0 : index
    %38 = vector.load %arg6[%c0_13, %c0_14] : memref<2x128xf32, #tpu.memory_space<vmem>>, vector<2x18xf32>
    tpu.vector_store %arg6[%c0_13, %c0_14], %17 {strides = array<i32>} : memref<2x128xf32, #tpu.memory_space<vmem>>, vector<2x18xf32>,
    %c0_15 = arith.constant 0 : index
    %c18 = arith.constant 18 : index
    %39 = vector.load %arg6[%c0_15, %c18] : memref<2x128xf32, #tpu.memory_space<vmem>>, vector<2x3xf32>
    tpu.vector_store %arg6[%c0_15, %c18], %23 {strides = array<i32>} : memref<2x128xf32, #tpu.memory_space<vmem>>, vector<2x3xf32>,
    %c0_16 = arith.constant 0 : index
    %c21 = arith.constant 21 : index
    %40 = vector.load %arg6[%c0_16, %c21] : memref<2x128xf32, #tpu.memory_space<vmem>>, vector<2x3xf32>
    tpu.vector_store %arg6[%c0_16, %c21], %9 {strides = array<i32>} : memref<2x128xf32, #tpu.memory_space<vmem>>, vector<2x3xf32>,
    %c0_17 = arith.constant 0 : index
    %c24 = arith.constant 24 : index
    %41 = vector.load %arg6[%c0_17, %c24] : memref<2x128xf32, #tpu.memory_space<vmem>>, vector<2x3xf32>
    tpu.vector_store %arg6[%c0_17, %c24], %32 {strides = array<i32>} : memref<2x128xf32, #tpu.memory_space<vmem>>, vector<2x3xf32>,
    %c0_18 = arith.constant 0 : index
    %c27 = arith.constant 27 : index
    %42 = vector.load %arg6[%c0_18, %c27] : memref<2x128xf32, #tpu.memory_space<vmem>>, vector<2x3xf32>
    tpu.vector_store %arg6[%c0_18, %c27], %37 {strides = array<i32>} : memref<2x128xf32, #tpu.memory_space<vmem>>, vector<2x3xf32>,
    %cst_19 = arith.constant 0.000000e+00 : f32
    %43 = vector.broadcast %cst_19 : f32 to vector<2x98xf32>
    %c0_20 = arith.constant 0 : index
    %c30 = arith.constant 30 : index
    %44 = vector.load %arg6[%c0_20, %c30] : memref<2x128xf32, #tpu.memory_space<vmem>>, vector<2x98xf32>
    tpu.vector_store %arg6[%c0_20, %c30], %43 {strides = array<i32>} : memref<2x128xf32, #tpu.memory_space<vmem>>, vector<2x98xf32>,
    return
  }
  func.func @transform_0(%arg0: i32) -> (i32, i32) {
    %c0_i32 = arith.constant 0 : i32
    %c0_i32_0 = arith.constant 0 : i32
    return %arg0, %c0_i32 : i32, i32
  }
  func.func @transform_1(%arg0: i32) -> (i32, i32) {
    %c0_i32 = arith.constant 0 : i32
    %c0_i32_0 = arith.constant 0 : i32
    %c0_i32_1 = arith.constant 0 : i32
    return %c0_i32, %c0_i32_0 : i32, i32
  }
  func.func @transform_2(%arg0: i32) -> (i32, i32) {
    %c0_i32 = arith.constant 0 : i32
    %c0_i32_0 = arith.constant 0 : i32
    %c0_i32_1 = arith.constant 0 : i32
    return %c0_i32, %c0_i32_0 : i32, i32
  }
  func.func @transform_3(%arg0: i32) -> (i32, i32) {
    %c0_i32 = arith.constant 0 : i32
    %c0_i32_0 = arith.constant 0 : i32
    %c0_i32_1 = arith.constant 0 : i32
    return %c0_i32, %c0_i32_0 : i32, i32
  }
  func.func @transform_4(%arg0: i32) -> (i32, i32) {
    %c0_i32 = arith.constant 0 : i32
    %c0_i32_0 = arith.constant 0 : i32
    %c0_i32_1 = arith.constant 0 : i32
    return %c0_i32, %c0_i32_0 : i32, i32
  }
  func.func @transform_5(%arg0: i32) -> (i32, i32) {
    %c0_i32 = arith.constant 0 : i32
    %c0_i32_0 = arith.constant 0 : i32
    return %arg0, %c0_i32 : i32, i32
  }
}

</mosaic_0001>

<llo_original>
// kernel: option_gaussian_actor_critic_forward.1
$region0: #{option_gaussian_actor_critic_forward.1}
  #allocation0 [shape = 'u32[]', space=smem, size = 0x4, offset = 0x4, fixed_abs, tag = 'smem constant byte address 0x4 - core index']
  #allocation1 [shape = 'u32[72,128]{1,0:T(1,128)}', space=vmem, size = 0x9000, scoped, tag = 'internal scratch']
  %s0 = inlined_call_operand.vmem [shape: bf16[2,16], index: 0, kind: input, shape index: {}]
  %s1 = inlined_call_operand.vmem [shape: bf16[16,256], index: 1, kind: input, shape index: {}]
  %s2 = inlined_call_operand.vmem [shape: f32[1,256], index: 2, kind: input, shape index: {}]
  %s3 = inlined_call_operand.vmem [shape: bf16[192,128], index: 3, kind: input, shape index: {}]
  %s4 = inlined_call_operand.vmem [shape: f32[1,128], index: 4, kind: input, shape index: {}]
  %s5 = inlined_call_operand.vmem [shape: f32[2,128], index: 5, kind: output, shape index: {}]
  %s6 = sld [smem:[#allocation0]]
  $region30: #{option_gaussian_actor_critic_forward.1} parent=0
    _
  %s8 = ssub.s32 1, %s6
  %s9 = scalar_select 0, %s8, %s6
  // Predicated region
  $region2: #{option_gaussian_actor_critic_forward.1} parent=0 // pred_check
    _
  $region3: #{option_gaussian_actor_critic_forward.1} parent=0 // pred_check_branch
    %11 = sbr.rel (0) target = $region5
  $region4: #{option_gaussian_actor_critic_forward.1} parent=0 // pred_region
    _
  $region5: #{option_gaussian_actor_critic_forward.1} parent=0 // pred_fallthru
    _
  // Predicated region
  $region6: #{option_gaussian_actor_critic_forward.1} parent=0 // pred_check
    _
  $region7: #{option_gaussian_actor_critic_forward.1} parent=0 // pred_check_branch
    %13 = sbr.rel (0) target = $region9
  $region8: #{option_gaussian_actor_critic_forward.1} parent=0 // pred_region
    _
  $region9: #{option_gaussian_actor_critic_forward.1} parent=0 // pred_fallthru
    _
  // Predicated region
  $region10: #{option_gaussian_actor_critic_forward.1} parent=0 // pred_check
    _
  $region11: #{option_gaussian_actor_critic_forward.1} parent=0 // pred_check_branch
    %15 = sbr.rel (0) target = $region13
  $region12: #{option_gaussian_actor_critic_forward.1} parent=0 // pred_region
    _
  $region13: #{option_gaussian_actor_critic_forward.1} parent=0 // pred_fallthru
    _
  // Predicated region
  $region14: #{option_gaussian_actor_critic_forward.1} parent=0 // pred_check
    _
  $region15: #{option_gaussian_actor_critic_forward.1} parent=0 // pred_check_branch
    %17 = sbr.rel (0) target = $region17
  $region16: #{option_gaussian_actor_critic_forward.1} parent=0 // pred_region
    _
  $region17: #{option_gaussian_actor_critic_forward.1} parent=0 // pred_fallthru
    _
  // Predicated region
  $region18: #{option_gaussian_actor_critic_forward.1} parent=0 // pred_check
    _
  $region19: #{option_gaussian_actor_critic_forward.1} parent=0 // pred_check_branch
    %19 = sbr.rel (0) target = $region21
  $region20: #{option_gaussian_actor_critic_forward.1} parent=0 // pred_region
    _
  $region21: #{option_gaussian_actor_critic_forward.1} parent=0 // pred_fallthru
    _
  %v21 = vld [vmem:[%s0] sm:$0x1]
  %v22 = vld [vmem:[%s1] sm:$0xff]
  %v23 = vld [vmem:[%s1 + $0x8] sm:$0xff]
  %v24 = vld [vmem:[%s2] sm:$0x3]
  %v26 = vperm.slane %v24, 0
  %v27 = vperm.slane %v24, 1
  %v32 = vunpack.c.l.b16 %v22
  %v33 = vunpack.c.h.b16 %v22
  %v34 = vunpack.c.l.b16 %v23
  %v35 = vunpack.c.h.b16 %v23
  %v36 = vpack.c.b16 %v34, %v32
  %v37 = vpack.c.b16 %v35, %v33
  %vm40 = vcmask 130048
  %v42 = vsel %vm40, %v21, 0
  %44 = vmatpush.bf16.msra.mxu0 0
  %45 = vmatpush.bf16.msra.mxu0 0
  %46 = vmatpush.bf16.msra.mxu0 0
  %47 = vmatpush.bf16.msra.mxu0 0
  %48 = vmatpush.bf16.msra.mxu0 0
  %49 = vmatpush.bf16.msra.mxu0 0
  %50 = vmatpush.bf16.msra.mxu0 0
  %51 = vmatpush.bf16.msra.mxu0 %v36
  %52 = vmatmul.bf16.gmra.mxu0 %v42
  %v53 = vpop.f32.mrf.mxu0
  %v54 = vadd.f32 %v26, %v53
  %v55 = vpop.f32.mrf.mxu0
  %56 = vdwg.mxu0
  %57 = vmatpush.bf16.msra.mxu0 0
  %58 = vmatpush.bf16.msra.mxu0 0
  %59 = vmatpush.bf16.msra.mxu0 0
  %60 = vmatpush.bf16.msra.mxu0 0
  %61 = vmatpush.bf16.msra.mxu0 0
  %62 = vmatpush.bf16.msra.mxu0 0
  %63 = vmatpush.bf16.msra.mxu0 0
  %64 = vmatpush.bf16.msra.mxu0 %v37
  %65 = vmatmul.bf16.gmra.mxu0 %v42
  %v66 = vpop.f32.mrf.mxu0
  %v67 = vadd.f32 %v27, %v66
  %v68 = vpop.f32.mrf.mxu0
  %69 = vdwg.mxu0
  %v70 = vtanh.pop %v54
  %v71 = vtanh.pop %v67
  %v72 = vpack.c.bf16 %v70, %v70
  %v73 = vpack.c.bf16 %v71, %v71
  %v74 = vld [vmem:[%s3] sm:$0xf]
  %v75 = vld [vmem:[%s3 + $0x4] sm:$0xf]
  %v76 = vld [vmem:[%s3 + $0x8] sm:$0xf]
  %v77 = vld [vmem:[%s3 + $0xc] sm:$0xf]
  %v78 = vld [vmem:[%s3 + $0x10] sm:$0xf]
  %v79 = vld [vmem:[%s3 + $0x14] sm:$0xf]
  %v80 = vld [vmem:[%s3 + $0x18] sm:$0xf]
  %v81 = vld [vmem:[%s3 + $0x1c] sm:$0xf]
  %v82 = vld [vmem:[%s3 + $0x20] sm:$0xf]
  %v83 = vld [vmem:[%s3 + $0x24] sm:$0xf]
  %v84 = vld [vmem:[%s3 + $0x28] sm:$0xf]
  %v85 = vld [vmem:[%s3 + $0x2c] sm:$0xf]
  %v86 = vld [vmem:[%s3 + $0x30] sm:$0xf]
  %v87 = vld [vmem:[%s3 + $0x34] sm:$0xf]
  %v88 = vld [vmem:[%s3 + $0x38] sm:$0xf]
  %v89 = vld [vmem:[%s3 + $0x3c] sm:$0xf]
  %v90 = vld [vmem:[%s3 + $0x40] sm:$0xf]
  %v91 = vld [vmem:[%s3 + $0x44] sm:$0xf]
  %v92 = vld [vmem:[%s3 + $0x48] sm:$0xf]
  %v93 = vld [vmem:[%s3 + $0x4c] sm:$0xf]
  %v94 = vld [vmem:[%s3 + $0x50] sm:$0xf]
  %v95 = vld [vmem:[%s3 + $0x54] sm:$0xf]
  %v96 = vld [vmem:[%s3 + $0x58] sm:$0xf]
  %v97 = vld [vmem:[%s3 + $0x5c] sm:$0xf]
  %v98 = vld [vmem:[%s4] sm:$0x1]
  %v100 = vperm.slane %v98, 0
  %v126 = vunpack.c.l.b16 %v74
  %v127 = vunpack.c.l.b16 %v75
  %v128 = vunpack.c.l.b16 %v76
  %v129 = vunpack.c.l.b16 %v77
  %v130 = vunpack.c.l.b16 %v78
  %v131 = vunpack.c.l.b16 %v79
  %v132 = vunpack.c.l.b16 %v80
  %v133 = vunpack.c.l.b16 %v81
  %v134 = vunpack.c.l.b16 %v82
  %v135 = vunpack.c.l.b16 %v83
  %v136 = vunpack.c.l.b16 %v84
  %v137 = vunpack.c.l.b16 %v85
  %v138 = vunpack.c.l.b16 %v86
  %v139 = vunpack.c.l.b16 %v87
  %v140 = vunpack.c.l.b16 %v88
  %v141 = vunpack.c.l.b16 %v89
  %v142 = vunpack.c.l.b16 %v90
  %v143 = vunpack.c.l.b16 %v91
  %v144 = vunpack.c.l.b16 %v92
  %v145 = vunpack.c.l.b16 %v93
  %v146 = vunpack.c.l.b16 %v94
  %v147 = vunpack.c.l.b16 %v95
  %v148 = vunpack.c.l.b16 %v96
  %v149 = vunpack.c.l.b16 %v97
  %v150 = vpack.c.b16 %v127, %v126
  %v151 = vpack.c.b16 %v129, %v128
  %v152 = vpack.c.b16 %v131, %v130
  %v153 = vpack.c.b16 %v133, %v132
  %v154 = vpack.c.b16 %v135, %v134
  %v155 = vpack.c.b16 %v137, %v136
  %v156 = vpack.c.b16 %v139, %v138
  %v157 = vpack.c.b16 %v141, %v140
  %v158 = vpack.c.b16 %v143, %v142
  %v159 = vpack.c.b16 %v145, %v144
  %v160 = vpack.c.b16 %v147, %v146
  %v161 = vpack.c.b16 %v149, %v148
  %vm174 = vcmask 523264
  %v176 = vsel %vm174, %v73, 0
  %178 = vmatpush.bf16.msra.mxu0 %v157
  %179 = vmatpush.bf16.msra.mxu0 %v156
  %180 = vmatpush.bf16.msra.mxu0 %v155
  %181 = vmatpush.bf16.msra.mxu0 %v154
  %182 = vmatpush.bf16.msra.mxu0 %v153
  %183 = vmatpush.bf16.msra.mxu0 %v152
  %184 = vmatpush.bf16.msra.mxu0 %v151
  %185 = vmatpush.bf16.msra.mxu0 %v150
  %186 = vmatmul.bf16.gmra.mxu0 %v72
  %v187 = vpop.f32.mrf.mxu0
  %v188 = vadd.f32 %v100, %v187
  %v189 = vpop.f32.mrf.mxu0
  %190 = vdwg.mxu0
  %191 = vmatpush.bf16.msra.mxu0 0
  %192 = vmatpush.bf16.msra.mxu0 0
  %193 = vmatpush.bf16.msra.mxu0 0
  %194 = vmatpush.bf16.msra.mxu0 0
  %195 = vmatpush.bf16.msra.mxu0 %v161
  %196 = vmatpush.bf16.msra.mxu0 %v160
  %197 = vmatpush.bf16.msra.mxu0 %v159
  %198 = vmatpush.bf16.msra.mxu0 %v158
  %199 = vmatmul.bf16.gmra.mxu0 %v176
  %v200 = vpop.f32.mrf.mxu0
  %v201 = vadd.f32 %v188, %v200
  %v202 = vpop.f32.mrf.mxu0
  %203 = vdwg.mxu0
  %v204 = vtanh.pop %v201
  %v205 = vxor.u32 %v201, 2147483648
  %v206 = vmul.f32 %v205, 1.442695
  %v207 = vpow.pop %v206
  %v208 = vadd.f32 %v207, 1.0
  %v209 = vrcp.pop %v208
  %v210 = vmul.f32 %v208, %v209
  %v211 = vsub.f32 1.0, %v210
  %v212 = vmul.f32 %v209, %v211
  %v213 = vadd.f32 %v209, %v212
  %vm214 = vweird.f32 %v208
  %vm215 = vweird.f32 %v209
  %vm216 = vmor %vm214, %vm215
  %v217 = vsel %vm216, %v209, %v213
  %v218 = vand.u32 2147483647, %v208
  %vm219 = vcmp.eq.f32.partialorder %v218, 8.507059e+37
  %v220 = vand.u32 %v208, 2147483648
  %v221 = vor.u32 1.1754944e-38, %v220
  %v222 = vsel %vm219, %v221, %v217
  %v223 = vmul.f32 1.0, %v222
  %vm224 = vcmask 542208
  %v225 = vsel %vm224, %v67, -inf
  %226 = vmax.xlane.f32.xlu0 %v225
  %v227 = vpop.xlane.xlu0 %226
  %v228 = vsub.f32 %v67, %v227
  %v229 = vmul.f32 %v228, 1.442695
  %v230 = vpow.pop %v229
  %232 = vrot.lane.b32.xlu0 %v230, 64
  %v233 = vpop.permute.xlu0 %232
  %vm235 = vcmask 17408
  %v236 = vsel %vm235, %v233, 0.0
  %237 = vadd.xlane.f32.xlu0 %v236
  %v238 = vpop.xlane.xlu0 %237
  %v239 = vrcp.pop %v238
  %v240 = vmul.f32 %v238, %v239
  %v241 = vsub.f32 1.0, %v240
  %v242 = vmul.f32 %v239, %v241
  %v243 = vadd.f32 %v239, %v242
  %vm244 = vweird.f32 %v238
  %vm245 = vweird.f32 %v239
  %vm246 = vmor %vm244, %vm245
  %v247 = vsel %vm246, %v239, %v243
  %v248 = vand.u32 2147483647, %v238
  %vm249 = vcmp.eq.f32.partialorder %v248, 8.507059e+37
  %v250 = vand.u32 %v238, 2147483648
  %v251 = vor.u32 1.1754944e-38, %v250
  %v252 = vsel %vm249, %v251, %v247
  %v253 = vmul.f32 %v230, %v252
  %v254 = vlog2.pop %v238
  %v255 = vmul.f32 %v254, 0.6931472
  %v256 = vsub.f32 %v228, %v255
  %vm257 = vcmask 140288
  %258 = vst.msk [vmem:[%s5] sm:$0x3] %vm257, %v204
  %vm259 = vcmask 165008
  %260 = vst.msk [vmem:[%s5] sm:$0x3] %vm259, %v223
  %262 = vrot.lane.b32.xlu0 %v67, 82
  %v263 = vpop.permute.xlu0 %262
  %vm265 = vcmask 189608
  %266 = vst.msk [vmem:[%s5] sm:$0x3] %vm265, %v263
  %268 = vrot.lane.b32.xlu0 %v253, 88
  %v269 = vpop.permute.xlu0 %268
  %vm271 = vcmask 214208
  %272 = vst.msk [vmem:[%s5] sm:$0x3] %vm271, %v269
  %274 = vrot.lane.b32.xlu0 %v256, 91
  %v275 = vpop.permute.xlu0 %274
  %vm277 = vcmask 238808
  %278 = vst.msk [vmem:[%s5] sm:$0x3] %vm277, %v275
  %vm279 = vcmask 1041648
  %280 = vst.msk [vmem:[%s5] sm:$0x3] %vm279, 0.0
  // Predicated region
  $region22: #{option_gaussian_actor_critic_forward.1} parent=0 // pred_check
    _
  $region23: #{option_gaussian_actor_critic_forward.1} parent=0 // pred_check_branch
    %282 = sbr.rel (0) target = $region25
  $region24: #{option_gaussian_actor_critic_forward.1} parent=0 // pred_region
    _
  $region25: #{option_gaussian_actor_critic_forward.1} parent=0 // pred_fallthru
    _
  // Predicated region
  $region26: #{option_gaussian_actor_critic_forward.1} parent=0 // pred_check
    _
  $region27: #{option_gaussian_actor_critic_forward.1} parent=0 // pred_check_branch
    %284 = sbr.rel (0) target = $region29
  $region28: #{option_gaussian_actor_critic_forward.1} parent=0 // pred_region
    _
  $region29: #{option_gaussian_actor_critic_forward.1} parent=0 // pred_fallthru
    _

</llo_original>
